<compile_context>
chip_gen: v7x
topology: tpu7x:2x2x1
jax: 0.10.0
libtpu: 0.0.40
codegen_flags: <defaults>
</compile_context>

<pallas_src>
import functools

import jax
import jax.numpy as jnp
from jax.experimental import pallas as pl
from jax.experimental.pallas import tpu as pltpu


def _cdiv(a: int, b: int) -> int:
    return -(-a // b)


def _round_up(x: int, m: int) -> int:
    return ((x + m - 1) // m) * m


def _vmem_plan() -> tuple[int, int]:
    """Return (vmem_limit_bytes, input-tile budget bytes) for this chip."""
    limit, budget = 32 << 20, 12 << 20          # conservative fallback
    try:
        cap = int(getattr(pltpu.get_tpu_info(), "vmem_capacity_bytes", 0) or 0)
    except Exception:
        cap = 0
    if cap >= 96 << 20:                          # v5e / v6e: 128 MiB VMEM
        limit, budget = 64 << 20, 40 << 20
    elif cap >= 48 << 20:                        # v7x: 64 MiB VMEM
        limit, budget = 48 << 20, 28 << 20
    return limit, budget


def _default_num_splits() -> int:
    """TensorCores per chip: 2 on v7x, 1 on v5e/v6e (fallback 1)."""
    try:
        kind = jax.devices()[0].device_kind.lower()
    except Exception:
        return 1
    return 2 if "7" in kind else 1


def _mae_kernel(y_true_ref, y_pred_ref, mask_ref, out_ref, acc_ref, *,
                block_rows: int, total_rows: int, total_blocks: int,
                inner_blocks: int, has_tail: bool):
    c = pl.program_id(0)   # split / TensorCore axis ("parallel")
    i = pl.program_id(1)   # reduction axis over row tiles ("arbitrary")

    @pl.when(i == 0)
    def _():
        acc_ref[...] = jnp.zeros_like(acc_ref)

    yt = y_true_ref[...].astype(jnp.float32)
    yp = y_pred_ref[...].astype(jnp.float32)
    absd = jnp.abs(yt - yp)

    if jnp.issubdtype(mask_ref.dtype, jnp.floating):
        contrib = mask_ref[...].astype(jnp.float32) * absd
    else:
        # 0/1 integer or bool mask: select instead of convert + multiply.
        contrib = jnp.where(mask_ref[...] != 0, absd, jnp.float32(0.0))

    n_lanes = contrib.shape[-1]

    def _fold(x):
        # Fold (block_rows, N) down to (8, N) with pure VPU vreg adds.
        if block_rows % 8 != 0 or block_rows == 8:
            return x
        return jnp.sum(x.reshape(block_rows // 8, 8, n_lanes), axis=0)

    if has_tail:
        bi = c * inner_blocks + i
        is_last = bi == total_blocks - 1

        @pl.when(is_last)
        def _():
            # Partial last tile: zero padded rows with a *select* so garbage
            # (even NaN/Inf) in the padded region cannot leak in.
            row_ids = bi * block_rows + jax.lax.broadcasted_iota(
                jnp.int32, contrib.shape, 0)
            acc_ref[...] += _fold(
                jnp.where(row_ids < total_rows, contrib, jnp.float32(0.0)))

        @pl.when(bi != total_blocks - 1)
        def _():
            # Hot path: no iota / compare / select.
            acc_ref[...] += _fold(contrib)
    else:
        acc_ref[...] += _fold(contrib)

    @pl.when(i == pl.num_programs(1) - 1)
    def _():
        # One cross-lane reduction per split, only in the epilogue.
        part = jnp.sum(acc_ref[...])
        out_ref[...] = jnp.full(out_ref.shape, part, jnp.float32)


def nbeats_mae(y_true: jax.Array, y_pred: jax.Array, mask: jax.Array, *,
               block_rows: int | None = None,
               num_splits: int | None = None) -> jax.Array:
    """Masked MAE = mean(mask * |y_true - y_pred|), computed in a Pallas kernel."""
    assert y_true.shape == y_pred.shape == mask.shape
    assert y_true.ndim == 2, "expected (batch, horizon) layout"
    total_elems = y_true.shape[0] * y_true.shape[1]

    # Lane-dense re-layout: the mean is over all elements, so the slab may be
    # reshaped freely.  Present a last dim that is a multiple of 128 whenever
    # possible so every DMA burst and every vreg lane carries useful data
    # (N-BEATS horizons are often 24-96).
    M, N = y_true.shape
    if N % 128 != 0 and total_elems % 128 == 0:
        width = 128
        for k in (8, 4, 2):
            if total_elems % (128 * k) == 0:
                width = 128 * k
                break
        M, N = total_elems // width, width
        y_true = y_true.reshape(M, N)
        y_pred = y_pred.reshape(M, N)
        mask = mask.reshape(M, N)

    vmem_limit, vmem_budget = _vmem_plan()

    if block_rows is None:
        # Budget: 3 input streams, double-buffered (the (8, N) accumulator is
        # negligible).
        in_bytes_per_row = N * (y_true.dtype.itemsize
                                + y_pred.dtype.itemsize
                                + mask.dtype.itemsize)
        block_rows = max(8, vmem_budget // (2 * in_bytes_per_row))
    block_rows = int(block_rows)

    # Legal tiling: either the full row extent (always allowed, even if not a
    # multiple of 8) or a multiple of 8 strictly smaller than M (the last
    # block may then be partial; the kernel masks it).
    if block_rows >= M or M <= 8:
        block_rows = M
    else:
        block_rows = max(8, (block_rows // 8) * 8)
        if block_rows >= M:
            block_rows = M

    total_blocks = _cdiv(M, block_rows)
    has_tail = (M % block_rows) != 0

    if num_splits is None:
        num_splits = _default_num_splits()
    num_splits = int(max(1, min(num_splits, total_blocks)))
    # Balanced partition only: each split owns exactly inner_blocks contiguous
    # blocks -> no clamped index_map, no duplicate-block DMA, ever.
    while total_blocks % num_splits != 0:
        num_splits -= 1
    inner_blocks = total_blocks // num_splits

    acc_rows = 8 if (block_rows % 8 == 0) else block_rows

    in_spec = pl.BlockSpec((block_rows, N),
                           lambda c, i, nb=inner_blocks: (c * nb + i, 0))

    kernel = functools.partial(
        _mae_kernel,
        block_rows=block_rows,
        total_rows=M,
        total_blocks=total_blocks,
        inner_blocks=inner_blocks,
        has_tail=has_tail,
    )

    out = pl.pallas_call(
        kernel,
        # One aligned (8, 128) partial-sum slab per split (per TensorCore).
        out_shape=jax.ShapeDtypeStruct((num_splits, 8, 128), jnp.float32),
        grid_spec=pltpu.PrefetchScalarGridSpec(
            num_scalar_prefetch=0,
            grid=(num_splits, inner_blocks),
            in_specs=[in_spec, in_spec, in_spec],
            # Same block across the reduction axis -> resident accumulator;
            # distinct block per split -> no cross-core races on v7x megacore.
            out_specs=pl.BlockSpec((1, 8, 128), lambda c, i: (c, 0, 0)),
            scratch_shapes=[pltpu.VMEM((acc_rows, N), jnp.float32)],
        ),
        compiler_params=pltpu.CompilerParams(
            dimension_semantics=("parallel", "arbitrary"),
            vmem_limit_bytes=vmem_limit,
        ),
    )(y_true, y_pred, mask)

    # Combine per-split partial sums and apply the 1/(M*N) mean normalization.
    return jnp.sum(out[:, 0, 0]) * jnp.float32(1.0 / total_elems)


if __name__ == "__main__":
    key = jax.random.PRNGKey(0)
    k1, k2, k3 = jax.random.split(key, 3)

    # Check 1: small shapes consistent with the module (batch=16, horizon=256),
    # int8 mask (select path), single block.
    B, H = 16, 256
    y_true = jax.random.normal(k1, (B, H), dtype=jnp.float32)
    y_pred = jax.random.normal(k2, (B, H), dtype=jnp.float32)
    mask = (jax.random.uniform(k3, (B, H)) > 0.3).astype(jnp.int8)
    result = jax.block_until_ready(nbeats_mae(y_true, y_pred, mask))
    ref = jnp.mean(mask.astype(jnp.float32) * jnp.abs(y_true - y_pred))
    assert jnp.allclose(result, ref, rtol=1e-5, atol=1e-6), (result, ref)

    # Check 2: ragged batch (partial last tile), multi-block grid, forced
    # 2-way balanced split, float32 (possibly non-binary) mask.
    k4, k5, k6 = jax.random.split(jax.random.PRNGKey(1), 3)
    B2, H2 = 300, 384
    y_true2 = jax.random.normal(k4, (B2, H2), dtype=jnp.float32)
    y_pred2 = jax.random.normal(k5, (B2, H2), dtype=jnp.float32)
    mask2 = (jax.random.uniform(k6, (B2, H2)) > 0.5).astype(jnp.float32)
    result2 = jax.block_until_ready(
        nbeats_mae(y_true2, y_pred2, mask2, block_rows=40, num_splits=2))
    ref2 = jnp.mean(mask2 * jnp.abs(y_true2 - y_pred2))
    assert jnp.allclose(result2, ref2, rtol=1e-5, atol=1e-6), (result2, ref2)

    # Check 3: small horizon (lane-dense reshape path) + bf16 inputs + int8 mask.
    k7, k8, k9 = jax.random.split(jax.random.PRNGKey(2), 3)
    B3, H3 = 176, 24
    y_true3 = jax.random.normal(k7, (B3, H3), dtype=jnp.bfloat16)
    y_pred3 = jax.random.normal(k8, (B3, H3), dtype=jnp.bfloat16)
    mask3 = (jax.random.uniform(k9, (B3, H3)) > 0.4).astype(jnp.int8)
    result3 = jax.block_until_ready(nbeats_mae(y_true3, y_pred3, mask3))
    ref3 = jnp.mean(mask3.astype(jnp.float32)
                    * jnp.abs(y_true3.astype(jnp.float32)
                              - y_pred3.astype(jnp.float32)))
    assert jnp.allclose(result3, ref3, rtol=1e-5, atol=1e-6), (result3, ref3)

    print("KERNEL_OK")
</pallas_src>

<mosaic_0001>
module attributes {stable_mosaic.version = 11 : i64} {
  func.func @_mae_kernel(%arg0: i32, %arg1: i32, %arg2: memref<16x256xf32, #tpu.memory_space<vmem>>, %arg3: memref<16x256xf32, #tpu.memory_space<vmem>>, %arg4: memref<16x256xi8, #tpu.memory_space<vmem>>, %arg5: memref<1x8x128xf32, #tpu.memory_space<vmem>>, %arg6: memref<8x256xf32, #tpu.memory_space<vmem>>) attributes {dimension_semantics = [#tpu.dimension_semantics<parallel>, #tpu.dimension_semantics<arbitrary>], iteration_bounds = array<i64: 1, 1>, scalar_prefetch = 0 : i64, scratch_operands = 1 : i64, tpu.core_type = #tpu.core_type<tc>, window_params = [{transform_indices = @transform_0, window_bounds = array<i64: 16, 256>}, {transform_indices = @transform_1, window_bounds = array<i64: 16, 256>}, {transform_indices = @transform_2, window_bounds = array<i64: 16, 256>}, {transform_indices = @transform_3, window_bounds = array<i64: 1, 8, 128>}]} {
    %c0_i32 = arith.constant 0 : i32
    %0 = arith.cmpi eq, %arg1, %c0_i32 : i32
    %1 = arith.extui %0 : i1 to i32
    %c0_i32_0 = arith.constant 0 : i32
    %2 = arith.cmpi ne, %1, %c0_i32_0 : i32
    scf.if %2 {
      %cst_13 = arith.constant 0.000000e+00 : f32
      %20 = vector.broadcast %cst_13 : f32 to vector<8x256xf32>
      %c0_14 = arith.constant 0 : index
      %c0_15 = arith.constant 0 : index
      %21 = vector.load %arg6[%c0_14, %c0_15] : memref<8x256xf32, #tpu.memory_space<vmem>>, vector<8x256xf32>
      tpu.vector_store %arg6[%c0_14, %c0_15], %20 {strides = array<i32>} : memref<8x256xf32, #tpu.memory_space<vmem>>, vector<8x256xf32>,
    } else {
    }
    %c0 = arith.constant 0 : index
    %c0_1 = arith.constant 0 : index
    %3 = vector.load %arg2[%c0, %c0_1] : memref<16x256xf32, #tpu.memory_space<vmem>>, vector<16x256xf32>
    %c0_2 = arith.constant 0 : index
    %c0_3 = arith.constant 0 : index
    %4 = vector.load %arg3[%c0_2, %c0_3] : memref<16x256xf32, #tpu.memory_space<vmem>>, vector<16x256xf32>
    %5 = arith.subf %3, %4 : vector<16x256xf32>
    %6 = math.absf %5 : vector<16x256xf32>
    %c0_4 = arith.constant 0 : index
    %c0_5 = arith.constant 0 : index
    %7 = vector.load %arg4[%c0_4, %c0_5] : memref<16x256xi8, #tpu.memory_space<vmem>>, vector<16x256xi8>
    %c0_i8 = arith.constant 0 : i8
    %8 = vector.broadcast %c0_i8 : i8 to vector<16x256xi8>
    %9 = arith.cmpi ne, %7, %8 : vector<16x256xi8>
    %cst = arith.constant 0.000000e+00 : f32
    %10 = vector.broadcast %cst : f32 to vector<16x256xf32>
    %11 = arith.select %9, %6, %10 : vector<16x256xi1>, vector<16x256xf32>
    %c0_6 = arith.constant 0 : index
    %c0_7 = arith.constant 0 : index
    %12 = vector.load %arg6[%c0_6, %c0_7] : memref<8x256xf32, #tpu.memory_space<vmem>>, vector<8x256xf32>
    %13 = vector.shape_cast %11 : vector<16x256xf32> to vector<2x8x256xf32>
    %cst_8 = arith.constant dense<0.000000e+00> : vector<8x256xf32>
    %14 = vector.multi_reduction <add>, %13, %cst_8 [0] : vector<2x8x256xf32> to vector<8x256xf32>
    %15 = arith.addf %12, %14 : vector<8x256xf32>
    %c0_9 = arith.constant 0 : index
    %c0_10 = arith.constant 0 : index
    %16 = vector.load %arg6[%c0_9, %c0_10] : memref<8x256xf32, #tpu.memory_space<vmem>>, vector<8x256xf32>
    tpu.vector_store %arg6[%c0_9, %c0_10], %15 {strides = array<i32>} : memref<8x256xf32, #tpu.memory_space<vmem>>, vector<8x256xf32>,
    %c0_i32_11 = arith.constant 0 : i32
    %17 = arith.cmpi eq, %arg1, %c0_i32_11 : i32
    %18 = arith.extui %17 : i1 to i32
    %c0_i32_12 = arith.constant 0 : i32
    %19 = arith.cmpi ne, %18, %c0_i32_12 : i32
    scf.if %19 {
      %c0_13 = arith.constant 0 : index
      %c0_14 = arith.constant 0 : index
      %20 = vector.load %arg6[%c0_13, %c0_14] : memref<8x256xf32, #tpu.memory_space<vmem>>, vector<8x256xf32>
      %21 = vector.shape_cast %20 : vector<8x256xf32> to vector<1x8x256xf32>
      %cst_15 = arith.constant dense<0.000000e+00> : vector<1xf32>
      %22 = vector.multi_reduction <add>, %21, %cst_15 [1, 2] : vector<1x8x256xf32> to vector<1xf32>
      %23 = vector.shape_cast %22 : vector<1xf32> to vector<1x1x1xf32>
      %24 = vector.extract %23[0, 0, 0] : f32 from vector<1x1x1xf32>
      %25 = vector.broadcast %24 : f32 to vector<1x8x128xf32>
      %c0_16 = arith.constant 0 : index
      %c0_17 = arith.constant 0 : index
      %c0_18 = arith.constant 0 : index
      %26 = vector.load %arg5[%c0_16, %c0_17, %c0_18] : memref<1x8x128xf32, #tpu.memory_space<vmem>>, vector<1x8x128xf32>
      tpu.vector_store %arg5[%c0_16, %c0_17, %c0_18], %25 {strides = array<i32>} : memref<1x8x128xf32, #tpu.memory_space<vmem>>, vector<1x8x128xf32>,
    } else {
    }
    return
  }
  func.func @transform_0(%arg0: i32, %arg1: i32) -> (i32, i32) {
    %c1_i32 = arith.constant 1 : i32
    %0 = arith.muli %arg0, %c1_i32 : i32
    %1 = arith.addi %0, %arg1 : i32
    %c0_i32 = arith.constant 0 : i32
    %c0_i32_0 = arith.constant 0 : i32
    return %1, %c0_i32 : i32, i32
  }
  func.func @transform_1(%arg0: i32, %arg1: i32) -> (i32, i32) {
    %c1_i32 = arith.constant 1 : i32
    %0 = arith.muli %arg0, %c1_i32 : i32
    %1 = arith.addi %0, %arg1 : i32
    %c0_i32 = arith.constant 0 : i32
    %c0_i32_0 = arith.constant 0 : i32
    return %1, %c0_i32 : i32, i32
  }
  func.func @transform_2(%arg0: i32, %arg1: i32) -> (i32, i32) {
    %c1_i32 = arith.constant 1 : i32
    %0 = arith.muli %arg0, %c1_i32 : i32
    %1 = arith.addi %0, %arg1 : i32
    %c0_i32 = arith.constant 0 : i32
    %c0_i32_0 = arith.constant 0 : i32
    return %1, %c0_i32 : i32, i32
  }
  func.func @transform_3(%arg0: i32, %arg1: i32) -> (i32, i32, i32) {
    %c0_i32 = arith.constant 0 : i32
    %c0_i32_0 = arith.constant 0 : i32
    %c0_i32_1 = arith.constant 0 : i32
    return %arg0, %c0_i32, %c0_i32_0 : i32, i32, i32
  }
}

</mosaic_0001>

<llo_original>
// kernel: tpu_custom_call.1
$region0: #{tpu_custom_call.1}
  #allocation0 [shape = 'u32[]', space=smem, size = 0x4, offset = 0x4, fixed_abs, tag = 'smem constant byte address 0x4 - core index']
  #allocation1 [shape = 'u32[144,128]{1,0:T(1,128)}', space=vmem, size = 0x12000, scoped, tag = 'internal scratch']
  #allocation2 [shape = 'f32[8,256]{1,0:T(8,128)}', space=vmem, size = 0x2000, scoped, tag = 'scratch operand']
  %s0 = inlined_call_operand.hbm [shape: f32[16,256], index: 0, kind: input, shape index: {}]
  %s1 = inlined_call_operand.hbm [shape: f32[16,256], index: 1, kind: input, shape index: {}]
  %s2 = inlined_call_operand.hbm [shape: s8[16,256], index: 2, kind: input, shape index: {}]
  %s3 = inlined_call_operand.hbm [shape: f32[1,8,128], index: 3, kind: output, shape index: {}]
  %s4 = sld [smem:[#allocation0]]
  $region42: #{tpu_custom_call.1} parent=0
    _
  %s6 = ssub.s32 1, %s4
  %s7 = scalar_select 0, %s6, %s4
  $region1: #{tpu_custom_call.1} parent=0
    #allocation3 [shape = 'u8[16384]{0}', space=vmem, size = 0x4000, scoped, tag = 'input window, operand 0, single buffered']
    #allocation4 [shape = 's32[1]{0}', space=sflag, size = 0x4, scoped, tag = 'scoped memory for tpu_custom_call.1']
    #allocation5 [shape = 's32[1]{0}', space=sflag, size = 0x4, scoped, tag = 'scoped memory for tpu_custom_call.1']
    #allocation6 [shape = 'u8[16384]{0}', space=vmem, size = 0x4000, scoped, tag = 'input window, operand 1, single buffered']
    #allocation7 [shape = 's32[1]{0}', space=sflag, size = 0x4, scoped, tag = 'scoped memory for tpu_custom_call.1']
    #allocation8 [shape = 'u8[4096]{0}', space=vmem, size = 0x1000, scoped, tag = 'input window, operand 2, single buffered']
    #allocation9 [shape = 'u8[4096]{0}', space=vmem, size = 0x1000, scoped, tag = 'output window, operand 0, single buffered']
    %8 = vsyncpa [#allocation4], 0
    %9 = vsyncpa [#allocation7], 0
    %10 = vsyncpa [#allocation5], 0
    // Predicated region
    $region2: #{tpu_custom_call.1} parent=1 // pred_check
      _
    $region3: #{tpu_custom_call.1} parent=1 // pred_check_branch
      %12 = sbr.rel (0) target = $region5
    $region4: #{tpu_custom_call.1} parent=1 // pred_region
      %s13 = sadd.s32 0, 0
      %s14 = smul.u32 2, %s13
      %s16 = ssub.s32 512, 512
      %17 = vsyncadd [#allocation4], %s16
      %s18 = smul.addr %s14, 2
      %s19 = smul.addr %s18, 128
      %s20 = scalar_lea.hbm %s0, %s19
      %s21 = sshll.u32 [#allocation3], 4
      %s22 = int_to_ptr.vmem [resolvable:$true] %s21
      %27 = dma.hbm_to_vmem [thread:$0]  %s20, 512, %s22, [#allocation4], 256, 256, 16
    $region5: #{tpu_custom_call.1} parent=1 // pred_fallthru
      _
    // Predicated region
    $region6: #{tpu_custom_call.1} parent=1 // pred_check
      _
    $region7: #{tpu_custom_call.1} parent=1 // pred_check_branch
      %29 = sbr.rel (0) target = $region9
    $region8: #{tpu_custom_call.1} parent=1 // pred_region
      %s30 = sadd.s32 0, 0
      %s31 = smul.u32 2, %s30
      %s33 = ssub.s32 512, 512
      %34 = vsyncadd [#allocation7], %s33
      %s35 = smul.addr %s31, 2
      %s36 = smul.addr %s35, 128
      %s37 = scalar_lea.hbm %s1, %s36
      %s38 = sshll.u32 [#allocation6], 4
      %s39 = int_to_ptr.vmem [resolvable:$true] %s38
      %44 = dma.hbm_to_vmem [thread:$0]  %s37, 512, %s39, [#allocation7], 256, 256, 16
    $region9: #{tpu_custom_call.1} parent=1 // pred_fallthru
      _
    // Predicated region
    $region10: #{tpu_custom_call.1} parent=1 // pred_check
      _
    $region11: #{tpu_custom_call.1} parent=1 // pred_check_branch
      %46 = sbr.rel (0) target = $region13
    $region12: #{tpu_custom_call.1} parent=1 // pred_region
      %s47 = sadd.s32 0, 0
      %s48 = smul.u32 2, %s47
      %s50 = ssub.s32 128, 128
      %51 = vsyncadd [#allocation7], %s50
      %s52 = smul.addr %s48, 2
      %s53 = smul.addr %s52, 32
      %s54 = scalar_lea.hbm %s2, %s53
      %s55 = sshll.u32 [#allocation8], 4
      %s56 = int_to_ptr.vmem [resolvable:$true] %s55
      %61 = dma.hbm_to_vmem [thread:$0]  %s54, 128, %s56, [#allocation7], 64, 64, 4
    $region13: #{tpu_custom_call.1} parent=1 // pred_fallthru
      _
    // Predicated region
    $region14: #{tpu_custom_call.1} parent=1 // pred_check
      _
    $region15: #{tpu_custom_call.1} parent=1 // pred_check_branch
      %63 = sbr.rel (0) target = $region17
    $region16: #{tpu_custom_call.1} parent=1 // pred_region
      %64 = dma.done [#allocation4], 512
    $region17: #{tpu_custom_call.1} parent=1 // pred_fallthru
      _
    // Predicated region
    $region18: #{tpu_custom_call.1} parent=1 // pred_check
      _
    $region19: #{tpu_custom_call.1} parent=1 // pred_check_branch
      %66 = sbr.rel (0) target = $region21
    $region20: #{tpu_custom_call.1} parent=1 // pred_region
      %67 = dma.done [#allocation7], 512
    $region21: #{tpu_custom_call.1} parent=1 // pred_fallthru
      _
    // Predicated region
    $region22: #{tpu_custom_call.1} parent=1 // pred_check
      _
    $region23: #{tpu_custom_call.1} parent=1 // pred_check_branch
      %69 = sbr.rel (0) target = $region25
    $region24: #{tpu_custom_call.1} parent=1 // pred_region
      %70 = dma.done [#allocation7], 128
    $region25: #{tpu_custom_call.1} parent=1 // pred_fallthru
      _
    %s71 = sadd.s32 0, 0
    %s72 = smul.u32 2, %s71
    %s73 = sadd.s32 0, 0
    %s74 = smul.u32 2, %s73
    %s75 = sadd.s32 0, 0
    %s76 = smul.u32 2, %s75
    %p79 = scmp.eq.s32.totalorder 0, 0
    // Predicated region
    $region26: #{tpu_custom_call.1} parent=1 // pred_check
      %p80 = pneg %p79
    $region27: #{tpu_custom_call.1} parent=1 // pred_check_branch
      %82 = sbr.rel (%p80) target = $region29
    $region28: #{tpu_custom_call.1} parent=1 // pred_region
      %83 = vst [vmem:[#allocation2] sm:$0xff] 0.0
      %84 = vst [vmem:[#allocation2 + $0x8] sm:$0xff] 0.0
    $region29: #{tpu_custom_call.1} parent=1 // pred_fallthru
      _
    %v85 = vld [vmem:[#allocation3] sm:$0xff]
    %v86 = vld [vmem:[#allocation3 + $0x8] sm:$0xff]
    %v87 = vld [vmem:[#allocation3 + $0x10] sm:$0xff]
    %v88 = vld [vmem:[#allocation3 + $0x18] sm:$0xff]
    %v89 = vld [vmem:[#allocation6] sm:$0xff]
    %v90 = vld [vmem:[#allocation6 + $0x8] sm:$0xff]
    %v91 = vld [vmem:[#allocation6 + $0x10] sm:$0xff]
    %v92 = vld [vmem:[#allocation6 + $0x18] sm:$0xff]
    %v93 = vsub.f32 %v85, %v89
    %v94 = vsub.f32 %v86, %v90
    %v95 = vsub.f32 %v87, %v91
    %v96 = vsub.f32 %v88, %v92
    %v97 = vand.u32 2147483647, %v93
    %v98 = vand.u32 2147483647, %v94
    %v99 = vand.u32 2147483647, %v95
    %v100 = vand.u32 2147483647, %v96
    %v101 = vld [vmem:[#allocation8] sm:$0xf]
    %v102 = vld [vmem:[#allocation8 + $0x4] sm:$0xf]
    %vm103 = vnez %v101
    %vm104 = vnez %v102
    %v105 = vsel %vm103, 16843009, 0
    %v106 = vsel %vm104, 16843009, 0
    %v107 = vunpack.c.0.s8 %v105
    %v108 = vunpack.c.1.s8 %v105
    %v109 = vunpack.c.0.s8 %v106
    %v110 = vunpack.c.1.s8 %v106
    %vm111 = vcmp.ne.s32.totalorder %v107, 0
    %vm112 = vcmp.ne.s32.totalorder %v108, 0
    %vm113 = vcmp.ne.s32.totalorder %v109, 0
    %vm114 = vcmp.ne.s32.totalorder %v110, 0
    %v115 = vsel %vm111, %v97, 0.0
    %v116 = vsel %vm112, %v98, 0.0
    %v117 = vsel %vm113, %v99, 0.0
    %v118 = vsel %vm114, %v100, 0.0
    %v119 = vld [vmem:[#allocation2] sm:$0xff]
    %v120 = vld [vmem:[#allocation2 + $0x8] sm:$0xff]
    %v121 = vadd.f32 %v115, %v117
    %v122 = vadd.f32 %v116, %v118
    %v123 = vadd.f32 %v119, %v121
    %v124 = vadd.f32 %v120, %v122
    %125 = vst [vmem:[#allocation2] sm:$0xff] %v123
    %126 = vst [vmem:[#allocation2 + $0x8] sm:$0xff] %v124
    // Predicated region
    $region30: #{tpu_custom_call.1} parent=1 // pred_check
      %p127 = pneg %p79
    $region31: #{tpu_custom_call.1} parent=1 // pred_check_branch
      %129 = sbr.rel (%p127) target = $region33
    $region32: #{tpu_custom_call.1} parent=1 // pred_region
      %v130 = vld [vmem:[#allocation2] sm:$0xff]
      %v131 = vld [vmem:[#allocation2 + $0x8] sm:$0xff]
      %v132 = vadd.f32 %v130, %v131
      %133 = vadd.xlane.f32.xlu0 %v132
      %v134 = vpop.xlane.xlu0 %133
      %v135 = vrot.slane %v134, 4
      %v136 = vadd.f32 %v134, %v135
      %v137 = vrot.slane %v136, 2
      %v138 = vadd.f32 %v136, %v137
      %v139 = vrot.slane %v138, 1
      %v140 = vadd.f32 %v138, %v139
      %s141 = vtos %v140
      %v142 = vstv %s141
      %143 = vst [vmem:[#allocation9] sm:$0xff] %v142
    $region33: #{tpu_custom_call.1} parent=1 // pred_fallthru
      _
    // Predicated region
    $region34: #{tpu_custom_call.1} parent=1 // pred_check
      _
    $region35: #{tpu_custom_call.1} parent=1 // pred_check_branch
      %145 = sbr.rel (0) target = $region37
    $region36: #{tpu_custom_call.1} parent=1 // pred_region
      %s147 = ssub.s32 128, 128
      %148 = vsyncadd [#allocation5], %s147
      %s150 = sshll.u32 [#allocation9], 4
      %s151 = int_to_ptr.vmem [resolvable:$true] %s150
      %153 = dma.vmem_to_hbm [thread:$0]  %s151, 128, %s3, [#allocation5]
    $region37: #{tpu_custom_call.1} parent=1 // pred_fallthru
      _
    // Predicated region
    $region38: #{tpu_custom_call.1} parent=1 // pred_check
      _
    $region39: #{tpu_custom_call.1} parent=1 // pred_check_branch
      %155 = sbr.rel (0) target = $region41
    $region40: #{tpu_custom_call.1} parent=1 // pred_region
      %156 = dma.done [#allocation5], 128
    $region41: #{tpu_custom_call.1} parent=1 // pred_fallthru
      _
    %157 = vsyncpa [#allocation4], 1
    %158 = vsyncpa [#allocation7], 1
    %159 = vsyncpa [#allocation5], 1

</llo_original>
